<compile_context>
chip_gen: v5e
topology: v5e:2x2
jax: 0.10.0
libtpu: 0.0.40
codegen_flags: <defaults>
</compile_context>

<pallas_src>
import functools
import math

import numpy as np
import jax
import jax.numpy as jnp
from jax import lax
from jax.experimental import pallas as pl
from jax.experimental.pallas import tpu as pltpu

PRELU_ALPHA = 0.25           # nn.PReLU() default init (single shared parameter)

_QUANT_MIN_ELEMS = 1 << 20   # int8-quantize weight matrices with >= 1M elements


def _round_up(x, m):
    return (x + m - 1) // m * m


# --------------------------- generation-gated budgets --------------------------
def _tpu_budgets():
    vmem = 128 * 1024 * 1024
    try:
        info = pltpu.get_tpu_info()
        vmem = int(getattr(info, "vmem_capacity_bytes", vmem))
    except Exception:
        pass
    if vmem <= 96 * 1024 * 1024:
        # v7x-class: 64 MiB VMEM / TensorCore.  Keep double-buffered B <= ~24 MiB and
        # cap tn at 2048 so the "parallel" j axis can shard across the 2 TCs.
        return dict(b_tile=12 * 1024 * 1024, tn_cap=2048,
                    vmem_limit=48 * 1024 * 1024)
    # v5e / v6e: 128 MiB VMEM -> large contiguous weight tiles (tn = full N).
    return dict(b_tile=16 * 1024 * 1024, tn_cap=4096,
                vmem_limit=64 * 1024 * 1024)


_BUDGETS = _tpu_budgets()


# ------------------------------ tile selection --------------------------------
def _pick_tn(N):
    # Full-dim N block (contiguous weight slab) unless it exceeds the per-generation
    # cap; all large N in this net are multiples of the cap.
    return N if N <= _BUDGETS['tn_cap'] else _BUDGETS['tn_cap']


def _pick_tk(K, tn, itemsize):
    cap = max(128, _BUDGETS['b_tile'] // (itemsize * tn))
    if K <= cap:
        return K                       # full-dim block, no K padding
    best = 128
    t = 128
    while t <= cap:                    # largest multiple of 128 dividing K (no padding)
        if K % t == 0:
            best = t
        t += 128
    return best


# ----------------------------- Pallas kernel ----------------------------------
def _conv_mm_kernel(a_ref, b_ref, scale_ref, bias_ref, o_ref, acc_ref, *, alpha):
    """One (tm, tn) output tile; grid axis 2 is the K reduction (innermost)."""
    @pl.when(pl.program_id(2) == 0)
    def _init():
        acc_ref[...] = jnp.zeros_like(acc_ref)

    # A is pre-cast bf16; B streams as int8 (exact in bf16) or bf16.  MXU runs
    # bf16 x bf16 with an f32 accumulator; per-channel dequant scale is folded
    # into the epilogue (dot(A, Bq * s) == dot(A, Bq) * s).
    acc_ref[...] += jnp.dot(a_ref[...], b_ref[...].astype(jnp.bfloat16),
                            preferred_element_type=jnp.float32)

    @pl.when(pl.program_id(2) == pl.num_programs(2) - 1)
    def _finalize():
        y = acc_ref[...] * scale_ref[...] + bias_ref[...]   # (tm,tn)*(1,tn)+(1,tn)
        if alpha is not None:                               # PReLU baked in
            y = jnp.where(y >= 0.0, y, alpha * y)
        o_ref[...] = y.astype(o_ref.dtype)


def _matmul_bias_prelu(a, layer, alpha):
    """PReLU((a @ (Wq * scale)) + bias).  a:(M,K) f32 patches."""
    M = a.shape[0]
    K, N = layer['K'], layer['N']
    w = layer['w']
    Kp, Np = w.shape
    tk, tn = layer['tk'], layer['tn']

    # tm multiple of 16 so the bf16 (16,128) sublane packing is clean.
    tm = min(_round_up(max(M, 1), 16), 256)
    Mp = _round_up(M, tm)

    a = a.astype(jnp.bfloat16)                  # cast once per layer (not per step)
    if (Mp, Kp) != a.shape:
        a = jnp.zeros((Mp, Kp), jnp.bfloat16).at[:M, :K].set(a)

    grid = (Mp // tm, Np // tn, Kp // tk)
    out = pl.pallas_call(
        functools.partial(_conv_mm_kernel, alpha=alpha),
        out_shape=jax.ShapeDtypeStruct((Mp, Np), jnp.float32),
        grid_spec=pltpu.PrefetchScalarGridSpec(
            num_scalar_prefetch=0,
            grid=grid,
            in_specs=[
                pl.BlockSpec((tm, tk), lambda i, j, k: (i, k)),
                pl.BlockSpec((tk, tn), lambda i, j, k: (k, j)),
                pl.BlockSpec((1, tn), lambda i, j, k: (0, j)),
                pl.BlockSpec((1, tn), lambda i, j, k: (0, j)),
            ],
            out_specs=pl.BlockSpec((tm, tn), lambda i, j, k: (i, j)),
            scratch_shapes=[pltpu.VMEM((tm, tn), jnp.float32)],
        ),
        compiler_params=pltpu.CompilerParams(
            dimension_semantics=("parallel", "parallel", "arbitrary"),
            vmem_limit_bytes=_BUDGETS['vmem_limit']),
    )(a, w, layer['scale'], layer['bias'])
    if (Mp, Np) != (M, N):
        out = out[:M, :N]
    return out


# -------------------------------- conv glue -----------------------------------
def _im2col(x, kh, kw, stride, pad):
    """x: (N,H,W,C) -> patches (N*OH*OW, KH*KW*C); K ordering = (kh, kw, c)."""
    n, h, w, c = x.shape
    xp = jnp.pad(x, ((0, 0), (pad, pad), (pad, pad), (0, 0))) if pad else x
    oh = (h + 2 * pad - kh) // stride + 1
    ow = (w + 2 * pad - kw) // stride + 1
    cols = []
    for i in range(kh):
        for j in range(kw):
            cols.append(xp[:, i:i + stride * oh:stride, j:j + stride * ow:stride, :])
    patches = jnp.stack(cols, axis=3)              # (N, OH, OW, KH*KW, C)
    return patches.reshape(n * oh * ow, kh * kw * c), (n, oh, ow)


def _conv_xla(x, layer, alpha):
    """Tiny-N tail layers: plain XLA conv (f32 weights), no Pallas launch."""
    y = lax.conv_general_dilated(
        x, layer['w'], (layer['stride'], layer['stride']),
        [(layer['pad'], layer['pad'])] * 2,
        dimension_numbers=("NHWC", "HWIO", "NHWC")) + layer['b']
    if alpha is not None:
        y = jnp.where(y >= 0.0, y, alpha * y)
    return y


def conv_layer(x, layer, alpha):
    """NHWC conv (PyTorch Conv2d semantics) + bias + optional PReLU(alpha)."""
    if layer['kind'] == 'xla':
        return _conv_xla(x, layer, alpha)
    patches, (n, oh, ow) = _im2col(x, layer['kh'], layer['kw'],
                                   layer['stride'], layer['pad'])
    y = _matmul_bias_prelu(patches, layer, alpha)
    return y.reshape(n, oh, ow, layer['N'])


# ------------------------------- parameters -----------------------------------
CNN_CFG = [      # (in, out, k, stride, pad)
    (3, 64, 3, 2, 1),
    (64, 64, 3, 2, 1),
    (64, 128, 3, 1, 1),
]
CONCAT_CFG = [
    (256, 256, 3, 2, 1),
    (256, 512, 3, 2, 1),
    (512, 1024, 3, 2, 1),
    (1024, 4096, 3, 2, 1),
    (4096, 4096, 3, 2, 1),
    (4096, 6, 3, 2, 1),
]


def _prep_conv(key, ic, oc, kh, kw, stride, pad):
    """Init one conv layer directly in matmul layout (K = kh*kw*ic rows, oc cols)."""
    K = kh * kw * ic
    # PyTorch init from the module: weight ~ N(0, sqrt(0.5/n)), n = kh*kw*in_ch; bias=0.
    w = jax.random.normal(key, (K, oc), jnp.float32) * math.sqrt(0.5 / K)
    base = dict(kh=kh, kw=kw, ic=ic, oc=oc, stride=stride, pad=pad, K=K, N=oc)

    if oc < 64:                                    # tiny-N tail layers -> XLA path
        base.update(kind='xla',
                    w=w.reshape(kh, kw, ic, oc),
                    b=jnp.zeros((oc,), jnp.float32))
        return base

    quantize = (K * oc) >= _QUANT_MIN_ELEMS
    tn = _pick_tn(oc)
    itemsize = 1 if quantize else 2
    tk = _pick_tk(K, tn, itemsize)
    Kp, Np = _round_up(K, tk), _round_up(oc, tn)

    if quantize:
        # Per-output-channel symmetric int8 quantization; scale applied in epilogue.
        scale = jnp.maximum(jnp.max(jnp.abs(w), axis=0), 1e-12) / 127.0
        w_store = jnp.clip(jnp.round(w / scale), -127.0, 127.0).astype(jnp.int8)
    else:
        scale = jnp.ones((oc,), jnp.float32)
        w_store = w.astype(jnp.bfloat16)

    if (Kp, Np) != (K, oc):                        # never triggers for this net
        w_store = jnp.zeros((Kp, Np), w_store.dtype).at[:K, :oc].set(w_store)

    base.update(kind='pallas',
                w=w_store,
                scale=jnp.zeros((1, Np), jnp.float32).at[0, :oc].set(scale),
                bias=jnp.zeros((1, Np), jnp.float32),
                tk=tk, tn=tn)
    return base


def init_params(key):
    keys = jax.random.split(key, len(CNN_CFG) + len(CONCAT_CFG) + 1)
    cnn = [_prep_conv(keys[i], ic, oc, k, k, s, p)
           for i, (ic, oc, k, s, p) in enumerate(CNN_CFG)]
    off = len(CNN_CFG)
    concat = [_prep_conv(keys[off + i], ic, oc, k, k, s, p)
              for i, (ic, oc, k, s, p) in enumerate(CONCAT_CFG)]
    # final Conv2d(6, 1, kernel_size=(1, 2), stride=2, padding=0), no PReLU
    last = _prep_conv(keys[-1], 6, 1, 1, 2, 2, 0)
    return cnn, concat, last


# --------------------------------- forward ------------------------------------
def forward(params, img_1, img_2):
    """img_1, img_2: NCHW float32 (PyTorch convention). Returns (-1, 1)."""
    cnn_layers, concat_layers, last_layer = params

    def branch(x):
        for lyr in cnn_layers:
            x = conv_layer(x, lyr, PRELU_ALPHA)     # Dropout = identity (eval)
        return x

    x1 = branch(jnp.transpose(img_1, (0, 2, 3, 1)))   # NCHW -> NHWC, shared cnn
    x2 = branch(jnp.transpose(img_2, (0, 2, 3, 1)))
    x = jnp.concatenate([x1, x2], axis=-1)            # torch.cat(dim=1) == NHWC channel cat
    for lyr in concat_layers:
        x = conv_layer(x, lyr, PRELU_ALPHA)
    y = conv_layer(x, last_layer, None)               # final conv: no PReLU
    return y.reshape(-1, 1)


# --------------------------- pure-JAX reference --------------------------------
def _conv_ref(x, layer):
    if layer['kind'] == 'xla':
        w, b = layer['w'], layer['b']
    else:
        K, N = layer['K'], layer['N']
        w = layer['w'][:K, :N].astype(jnp.float32)
        if layer['w'].dtype == jnp.int8:
            w = w * layer['scale'][0, :N]             # dequantize (same values as kernel)
        w = w.reshape(layer['kh'], layer['kw'], layer['ic'], N)
        b = layer['bias'][0, :N]
    y = lax.conv_general_dilated(
        x, w, (layer['stride'], layer['stride']),
        [(layer['pad'], layer['pad'])] * 2,
        dimension_numbers=("NHWC", "HWIO", "NHWC"))
    return y + b


def forward_ref(params, img_1, img_2):
    cnn_layers, concat_layers, last_layer = params

    def branch(x):
        for lyr in cnn_layers:
            y = _conv_ref(x, lyr)
            x = jnp.where(y >= 0, y, PRELU_ALPHA * y)
        return x

    x = jnp.concatenate([branch(jnp.transpose(img_1, (0, 2, 3, 1))),
                         branch(jnp.transpose(img_2, (0, 2, 3, 1)))], axis=-1)
    for lyr in concat_layers:
        y = _conv_ref(x, lyr)
        x = jnp.where(y >= 0, y, PRELU_ALPHA * y)
    y = _conv_ref(x, last_layer)
    return y.reshape(-1, 1)


if __name__ == "__main__":
    key = jax.random.PRNGKey(0)
    k_p, k1, k2 = jax.random.split(key, 3)
    params = init_params(k_p)

    # Width must be >= 257 to survive the 8 stride-2 convs plus the final (1,2) conv;
    # height/batch are kept small.
    B, C, H, W = 2, 3, 8, 258
    img_1 = jax.random.normal(k1, (B, C, H, W), jnp.float32)
    img_2 = jax.random.normal(k2, (B, C, H, W), jnp.float32)

    out = jax.block_until_ready(forward(params, img_1, img_2))
    ref = jax.block_until_ready(forward_ref(params, img_1, img_2))

    assert out.shape == (B, 1), out.shape
    np.testing.assert_allclose(np.asarray(out), np.asarray(ref), rtol=5e-2, atol=5e-4)
    print("KERNEL_OK")
</pallas_src>

<mosaic_0001>
module attributes {stable_mosaic.version = 11 : i64} {
  func.func @_conv_mm_kernel(%arg0: i32, %arg1: i32, %arg2: i32, %arg3: memref<256x27xbf16, #tpu.memory_space<vmem>>, %arg4: memref<27x64xbf16, #tpu.memory_space<vmem>>, %arg5: memref<1x64xf32, #tpu.memory_space<vmem>>, %arg6: memref<1x64xf32, #tpu.memory_space<vmem>>, %arg7: memref<256x64xf32, #tpu.memory_space<vmem>>, %arg8: memref<256x64xf32, #tpu.memory_space<vmem>>) attributes {dimension_semantics = [#tpu.dimension_semantics<parallel>, #tpu.dimension_semantics<parallel>, #tpu.dimension_semantics<arbitrary>], iteration_bounds = array<i64: 5, 1, 1>, scalar_prefetch = 0 : i64, scratch_operands = 1 : i64, tpu.core_type = #tpu.core_type<tc>, window_params = [{transform_indices = @transform_0, window_bounds = array<i64: 256, 27>}, {transform_indices = @transform_1, window_bounds = array<i64: 27, 64>}, {transform_indices = @transform_2, window_bounds = array<i64: 1, 64>}, {transform_indices = @transform_3, window_bounds = array<i64: 1, 64>}, {transform_indices = @transform_4, window_bounds = array<i64: 256, 64>}]} {
    %c0_i32 = arith.constant 0 : i32
    %0 = arith.cmpi eq, %arg2, %c0_i32 : i32
    %1 = arith.extui %0 : i1 to i32
    %c0_i32_0 = arith.constant 0 : i32
    %2 = arith.cmpi ne, %1, %c0_i32_0 : i32
    scf.if %2 {
      %cst_10 = arith.constant 0.000000e+00 : f32
      %12 = vector.broadcast %cst_10 : f32 to vector<256x64xf32>
      %c0_11 = arith.constant 0 : index
      %c0_12 = arith.constant 0 : index
      %13 = vector.load %arg8[%c0_11, %c0_12] : memref<256x64xf32, #tpu.memory_space<vmem>>, vector<256x64xf32>
      tpu.vector_store %arg8[%c0_11, %c0_12], %12 {strides = array<i32>} : memref<256x64xf32, #tpu.memory_space<vmem>>, vector<256x64xf32>,
    } else {
    }
    %c0 = arith.constant 0 : index
    %c0_1 = arith.constant 0 : index
    %3 = vector.load %arg8[%c0, %c0_1] : memref<256x64xf32, #tpu.memory_space<vmem>>, vector<256x64xf32>
    %c0_2 = arith.constant 0 : index
    %c0_3 = arith.constant 0 : index
    %4 = vector.load %arg3[%c0_2, %c0_3] : memref<256x27xbf16, #tpu.memory_space<vmem>>, vector<256x27xbf16>
    %c0_4 = arith.constant 0 : index
    %c0_5 = arith.constant 0 : index
    %5 = vector.load %arg4[%c0_4, %c0_5] : memref<27x64xbf16, #tpu.memory_space<vmem>>, vector<27x64xbf16>
    %cst = arith.constant dense<0.000000e+00> : vector<256x64xf32>
    %6 = tpu.matmul %4, %5, %cst {dimension_numbers = #tpu.dot_dimension_numbers<[1], [0], [0], [1], [0, 0, 1, 1], [], []>} : vector<256x27xbf16>, vector<27x64xbf16>, vector<256x64xf32> -> vector<256x64xf32>
    %7 = arith.addf %3, %6 : vector<256x64xf32>
    %c0_6 = arith.constant 0 : index
    %c0_7 = arith.constant 0 : index
    %8 = vector.load %arg8[%c0_6, %c0_7] : memref<256x64xf32, #tpu.memory_space<vmem>>, vector<256x64xf32>
    tpu.vector_store %arg8[%c0_6, %c0_7], %7 {strides = array<i32>} : memref<256x64xf32, #tpu.memory_space<vmem>>, vector<256x64xf32>,
    %c0_i32_8 = arith.constant 0 : i32
    %9 = arith.cmpi eq, %arg2, %c0_i32_8 : i32
    %10 = arith.extui %9 : i1 to i32
    %c0_i32_9 = arith.constant 0 : i32
    %11 = arith.cmpi ne, %10, %c0_i32_9 : i32
    scf.if %11 {
      %c0_10 = arith.constant 0 : index
      %c0_11 = arith.constant 0 : index
      %12 = vector.load %arg8[%c0_10, %c0_11] : memref<256x64xf32, #tpu.memory_space<vmem>>, vector<256x64xf32>
      %c0_12 = arith.constant 0 : index
      %c0_13 = arith.constant 0 : index
      %13 = vector.load %arg5[%c0_12, %c0_13] : memref<1x64xf32, #tpu.memory_space<vmem>>, vector<1x64xf32>
      %14 = vector.broadcast %13 : vector<1x64xf32> to vector<256x64xf32>
      %15 = arith.mulf %12, %14 : vector<256x64xf32>
      %c0_14 = arith.constant 0 : index
      %c0_15 = arith.constant 0 : index
      %16 = vector.load %arg6[%c0_14, %c0_15] : memref<1x64xf32, #tpu.memory_space<vmem>>, vector<1x64xf32>
      %17 = vector.broadcast %16 : vector<1x64xf32> to vector<256x64xf32>
      %18 = arith.addf %15, %17 : vector<256x64xf32>
      %cst_16 = arith.constant 0.000000e+00 : f32
      %19 = vector.broadcast %cst_16 : f32 to vector<256x64xf32>
      %20 = arith.cmpf oge, %18, %19 : vector<256x64xf32>
      %cst_17 = arith.constant 2.500000e-01 : f32
      %21 = vector.broadcast %cst_17 : f32 to vector<256x64xf32>
      %22 = arith.mulf %21, %18 : vector<256x64xf32>
      %23 = arith.select %20, %18, %22 : vector<256x64xi1>, vector<256x64xf32>
      %c0_18 = arith.constant 0 : index
      %c0_19 = arith.constant 0 : index
      %24 = vector.load %arg7[%c0_18, %c0_19] : memref<256x64xf32, #tpu.memory_space<vmem>>, vector<256x64xf32>
      tpu.vector_store %arg7[%c0_18, %c0_19], %23 {strides = array<i32>} : memref<256x64xf32, #tpu.memory_space<vmem>>, vector<256x64xf32>,
    } else {
    }
    return
  }
  func.func @transform_0(%arg0: i32, %arg1: i32, %arg2: i32) -> (i32, i32) {
    %c0_i32 = arith.constant 0 : i32
    return %arg0, %arg2 : i32, i32
  }
  func.func @transform_1(%arg0: i32, %arg1: i32, %arg2: i32) -> (i32, i32) {
    %c0_i32 = arith.constant 0 : i32
    return %arg2, %arg1 : i32, i32
  }
  func.func @transform_2(%arg0: i32, %arg1: i32, %arg2: i32) -> (i32, i32) {
    %c0_i32 = arith.constant 0 : i32
    %c0_i32_0 = arith.constant 0 : i32
    return %c0_i32, %arg1 : i32, i32
  }
  func.func @transform_3(%arg0: i32, %arg1: i32, %arg2: i32) -> (i32, i32) {
    %c0_i32 = arith.constant 0 : i32
    %c0_i32_0 = arith.constant 0 : i32
    return %c0_i32, %arg1 : i32, i32
  }
  func.func @transform_4(%arg0: i32, %arg1: i32, %arg2: i32) -> (i32, i32) {
    %c0_i32 = arith.constant 0 : i32
    return %arg0, %arg1 : i32, i32
  }
}

</mosaic_0001>

<llo_original>
// kernel: tpu_custom_call.1
$region0: #{tpu_custom_call.1}
  #allocation0 [shape = 'u32[]', space=smem, size = 0x4, offset = 0x4, fixed_abs, tag = 'smem constant byte address 0x4 - core index']
  #allocation1 [shape = 'u32[72,128]{1,0:T(1,128)}', space=vmem, size = 0x9000, scoped, tag = 'internal scratch']
  #allocation2 [shape = 'f32[256,64]{1,0:T(8,128)}', space=vmem, size = 0x20000, scoped, tag = 'scratch operand']
  %s0 = inlined_call_operand.vmem [shape: bf16[1280,27], index: 0, kind: input, shape index: {}]
  %s1 = inlined_call_operand.vmem [shape: bf16[27,64], index: 1, kind: input, shape index: {}]
  %s2 = inlined_call_operand.vmem [shape: f32[1,64], index: 2, kind: input, shape index: {}]
  %s3 = inlined_call_operand.vmem [shape: f32[1,64], index: 3, kind: input, shape index: {}]
  %s4 = inlined_call_operand.vmem [shape: f32[1280,64], index: 4, kind: output, shape index: {}]
  %s5 = sld [smem:[#allocation0]]
  $region57: #{tpu_custom_call.1} parent=0
    _
  %s7 = ssub.s32 1, %s5
  %s8 = scalar_select 0, %s7, %s5
  loop: start=0, step=1, limit=7
  $region2: #{tpu_custom_call.1} parent=0 // loop_pre_header
    _
  $region3: #{tpu_custom_call.1} parent=0 // loop_header
    %s10 = sphi 0, %s14
    %p11 = scmp.ge.s32.totalorder %s10, 7
    %s17 = sphi 0, %s36
    %s18 = sphi 0, %s32
    %s19 = sphi 0, %s28
    %s20 = sphi 0, %s17
    %s21 = sphi 0, %s18
    %s22 = sphi 0, %s19
    %s23 = sphi 0, %s20
    %s24 = sphi 0, %s21
    %s25 = sphi 0, %s22
    %s41 = sphi 0, %s43
    %s44 = sphi 0, %s41
    %s45 = sphi 0, %s44
    %s61 = sphi 0, %s45
    %s69 = sphi 0, %s71
    %s72 = sphi 0, %s69
    %s73 = sphi 0, %s72
    %s89 = sphi 0, %s73
    %s95 = sphi 0, %s97
    %s98 = sphi 0, %s95
    %s99 = sphi 0, %s98
    %s115 = sphi 0, %s99
    %s121 = sphi 0, %s123
    %s124 = sphi 0, %s121
    %s125 = sphi 0, %s124
    %s141 = sphi 0, %s125
    %s149 = sphi 0, %s151
    %s152 = sphi 0, %s149
    %s153 = sphi 0, %s152
    %s169 = sphi 0, %s153
  $region4: #{tpu_custom_call.1} parent=0 // loop_header_branch
    %13 = sbr.rel (%p11) target = $region8
  $region5: #{tpu_custom_call.1} parent=0 // loop_body
    %s15 = ssub.s32 %s10, 1
    %s16 = ssub.s32 %s10, 2
    %s26 = sadd.s32 1, %s19
    %p27 = scmp.ge.s32.totalorder %s26, 1
    %s28 = scalar_select %p27, 0, %s26
    %s29 = sadd.s32 1, %s18
    %s30 = scalar_select %p27, %s29, %s18
    %p31 = scmp.ge.s32.totalorder %s30, 1
    %s32 = scalar_select %p31, 0, %s30
    %s33 = sadd.s32 1, %s17
    %s34 = scalar_select %p31, %s33, %s17
    %p35 = scmp.ge.s32.totalorder %s34, 5
    %s36 = scalar_select %p35, 0, %s34
    %s37 = ssub.s32 %s17, %s36
    %s38 = ssub.s32 %s19, %s28
    %s39 = sor.u32 %s37, %s38
    %p40 = scmp.eq.s32.totalorder %s39, 0
    %s42 = sadd.s32 %s41, 1
    %s43 = scalar_select %p40, %s41, %s42
    %p46 = pneg %p40
    %p47 = scmp.eq.s32.totalorder %s10, 4
    %p48 = por %p46, %p47
    %p49 = scmp.ne.s32.totalorder %s41, %s44
    %p50 = scmp.eq.s32.totalorder %s10, 0
    %p51 = por %p49, %p50
    %p52 = scmp.ne.s32.totalorder %s41, %s44
    %p53 = scmp.eq.s32.totalorder %s15, 4
    %p54 = por %p52, %p53
    %p55 = scmp.ne.s32.totalorder %s44, %s45
    %p56 = scmp.eq.s32.totalorder %s15, 0
    %p57 = por %p55, %p56
    %p58 = scmp.ne.s32.totalorder %s44, %s45
    %p59 = scmp.eq.s32.totalorder %s16, 4
    %p60 = por %p58, %p59
    %p62 = scmp.ne.s32.totalorder %s45, %s61
    %p63 = scmp.eq.s32.totalorder %s16, 0
    %p64 = por %p62, %p63
    %s65 = ssub.s32 %s19, %s28
    %s66 = ssub.s32 %s18, %s32
    %s67 = sor.u32 %s65, %s66
    %p68 = scmp.eq.s32.totalorder %s67, 0
    %s70 = sadd.s32 %s69, 1
    %s71 = scalar_select %p68, %s69, %s70
    %p74 = pneg %p68
    %p75 = scmp.eq.s32.totalorder %s10, 4
    %p76 = por %p74, %p75
    %p77 = scmp.ne.s32.totalorder %s69, %s72
    %p78 = scmp.eq.s32.totalorder %s10, 0
    %p79 = por %p77, %p78
    %p80 = scmp.ne.s32.totalorder %s69, %s72
    %p81 = scmp.eq.s32.totalorder %s15, 4
    %p82 = por %p80, %p81
    %p83 = scmp.ne.s32.totalorder %s72, %s73
    %p84 = scmp.eq.s32.totalorder %s15, 0
    %p85 = por %p83, %p84
    %p86 = scmp.ne.s32.totalorder %s72, %s73
    %p87 = scmp.eq.s32.totalorder %s16, 4
    %p88 = por %p86, %p87
    %p90 = scmp.ne.s32.totalorder %s73, %s89
    %p91 = scmp.eq.s32.totalorder %s16, 0
    %p92 = por %p90, %p91
    %s93 = ssub.s32 %s18, %s32
    %p94 = scmp.eq.s32.totalorder %s93, 0
    %s96 = sadd.s32 %s95, 1
    %s97 = scalar_select %p94, %s95, %s96
    %p100 = pneg %p94
    %p101 = scmp.eq.s32.totalorder %s10, 4
    %p102 = por %p100, %p101
    %p103 = scmp.ne.s32.totalorder %s95, %s98
    %p104 = scmp.eq.s32.totalorder %s10, 0
    %p105 = por %p103, %p104
    %p106 = scmp.ne.s32.totalorder %s95, %s98
    %p107 = scmp.eq.s32.totalorder %s15, 4
    %p108 = por %p106, %p107
    %p109 = scmp.ne.s32.totalorder %s98, %s99
    %p110 = scmp.eq.s32.totalorder %s15, 0
    %p111 = por %p109, %p110
    %p112 = scmp.ne.s32.totalorder %s98, %s99
    %p113 = scmp.eq.s32.totalorder %s16, 4
    %p114 = por %p112, %p113
    %p116 = scmp.ne.s32.totalorder %s99, %s115
    %p117 = scmp.eq.s32.totalorder %s16, 0
    %p118 = por %p116, %p117
    %s119 = ssub.s32 %s18, %s32
    %p120 = scmp.eq.s32.totalorder %s119, 0
    %s122 = sadd.s32 %s121, 1
    %s123 = scalar_select %p120, %s121, %s122
    %p126 = pneg %p120
    %p127 = scmp.eq.s32.totalorder %s10, 4
    %p128 = por %p126, %p127
    %p129 = scmp.ne.s32.totalorder %s121, %s124
    %p130 = scmp.eq.s32.totalorder %s10, 0
    %p131 = por %p129, %p130
    %p132 = scmp.ne.s32.totalorder %s121, %s124
    %p133 = scmp.eq.s32.totalorder %s15, 4
    %p134 = por %p132, %p133
    %p135 = scmp.ne.s32.totalorder %s124, %s125
    %p136 = scmp.eq.s32.totalorder %s15, 0
    %p137 = por %p135, %p136
    %p138 = scmp.ne.s32.totalorder %s124, %s125
    %p139 = scmp.eq.s32.totalorder %s16, 4
    %p140 = por %p138, %p139
    %p142 = scmp.ne.s32.totalorder %s125, %s141
    %p143 = scmp.eq.s32.totalorder %s16, 0
    %p144 = por %p142, %p143
    %s145 = ssub.s32 %s17, %s36
    %s146 = ssub.s32 %s18, %s32
    %s147 = sor.u32 %s145, %s146
    %p148 = scmp.eq.s32.totalorder %s147, 0
    %s150 = sadd.s32 %s149, 1
    %s151 = scalar_select %p148, %s149, %s150
    %p154 = pneg %p148
    %p155 = scmp.eq.s32.totalorder %s10, 4
    %p156 = por %p154, %p155
    %p157 = scmp.ne.s32.totalorder %s149, %s152
    %p158 = scmp.eq.s32.totalorder %s10, 0
    %p159 = por %p157, %p158
    %p160 = scmp.ne.s32.totalorder %s149, %s152
    %p161 = scmp.eq.s32.totalorder %s15, 4
    %p162 = por %p160, %p161
    %p163 = scmp.ne.s32.totalorder %s152, %s153
    %p164 = scmp.eq.s32.totalorder %s15, 0
    %p165 = por %p163, %p164
    %p166 = scmp.ne.s32.totalorder %s152, %s153
    %p167 = scmp.eq.s32.totalorder %s16, 4
    %p168 = por %p166, %p167
    %p170 = scmp.ne.s32.totalorder %s153, %s169
    %p171 = scmp.eq.s32.totalorder %s16, 0
    %p172 = por %p170, %p171
    %p173 = scmp.le.s32.totalorder 1, %s10
    %p174 = scmp.lt.s32.totalorder %s10, 6
    %p175 = pnand %p173, %p174
    %p176 = pneg %p175
    // Predicated region
    $region9: #{tpu_custom_call.1} parent=5 // pred_check
      _
    $region10: #{tpu_custom_call.1} parent=5 // pred_check_branch
      %178 = sbr.rel (%p175) target = $region12
    $region11: #{tpu_custom_call.1} parent=5 // pred_region
      %s179 = ssub.s32 %s10, 1
      // Predicated region
      $region13: #{tpu_custom_call.1} parent=11 // pred_check
        %p180 = pneg %p85
      $region14: #{tpu_custom_call.1} parent=11 // pred_check_branch
        %182 = sbr.rel (%p180) target = $region16
      $region15: #{tpu_custom_call.1} parent=11 // pred_region
        %s183 = smul.u32 4, %s22
        %p184 = scmp.lt.s32.totalorder %s183, 3
        %s185 = scalar_select %p184, %s183, 3
        %p186 = scmp.lt.s32.totalorder %s21, 0
        %s187 = scalar_select %p186, %s21, 0
        %s188 = sadd.s32 %s187, %s185
        %s189 = smul.addr %s188, 4
        %s190 = scalar_lea.vmem %s1, %s189
        %s191 = smul.u32 4, %s22
      $region16: #{tpu_custom_call.1} parent=11 // pred_fallthru
        _
      // Predicated region
      $region17: #{tpu_custom_call.1} parent=11 // pred_check
        %p192 = pneg %p111
      $region18: #{tpu_custom_call.1} parent=11 // pred_check_branch
        %194 = sbr.rel (%p192) target = $region20
      $region19: #{tpu_custom_call.1} parent=11 // pred_region
        %p195 = scmp.lt.s32.totalorder %s21, 0
        %s196 = scalar_select %p195, %s21, 0
        %s197 = scalar_lea.vmem %s2, %s196
      $region20: #{tpu_custom_call.1} parent=11 // pred_fallthru
        _
      // Predicated region
      $region21: #{tpu_custom_call.1} parent=11 // pred_check
        %p198 = pneg %p137
      $region22: #{tpu_custom_call.1} parent=11 // pred_check_branch
        %200 = sbr.rel (%p198) target = $region24
      $region23: #{tpu_custom_call.1} parent=11 // pred_region
        %p201 = scmp.lt.s32.totalorder %s21, 0
        %s202 = scalar_select %p201, %s21, 0
        %s203 = scalar_lea.vmem %s3, %s202
      $region24: #{tpu_custom_call.1} parent=11 // pred_fallthru
        _
    $region12: #{tpu_custom_call.1} parent=5 // pred_fallthru
      _
    %p204 = scmp.lt.s32.totalorder %s10, 5
    // Predicated region
    $region25: #{tpu_custom_call.1} parent=5 // pred_check
      %p205 = pneg %p204
    $region26: #{tpu_custom_call.1} parent=5 // pred_check_branch
      %207 = sbr.rel (%p205) target = $region28
    $region27: #{tpu_custom_call.1} parent=5 // pred_region
      // Predicated region
      $region29: #{tpu_custom_call.1} parent=27 // pred_check
        %p208 = pneg %p51
      $region30: #{tpu_custom_call.1} parent=27 // pred_check_branch
        %210 = sbr.rel (%p208) target = $region32
      $region31: #{tpu_custom_call.1} parent=27 // pred_region
        %s211 = smul.u32 32, %s17
        %p212 = scmp.lt.s32.totalorder %s211, 159
        %s213 = scalar_select %p212, %s211, 159
        %p214 = scmp.lt.s32.totalorder %s19, 0
        %s215 = scalar_select %p214, %s19, 0
        %s216 = sadd.s32 %s215, %s213
        %s217 = smul.addr %s216, 4
        %s218 = scalar_lea.vmem %s0, %s217
        %s219 = smul.u32 32, %s17
      $region32: #{tpu_custom_call.1} parent=27 // pred_fallthru
        _
    $region28: #{tpu_custom_call.1} parent=5 // pred_fallthru
      _
    %p220 = scmp.le.s32.totalorder 1, %s10
    %p221 = scmp.lt.s32.totalorder %s10, 6
    %p222 = pnand %p220, %p221
    %p223 = pneg %p222
    // Predicated region
    $region33: #{tpu_custom_call.1} parent=5 // pred_check
      _
    $region34: #{tpu_custom_call.1} parent=5 // pred_check_branch
      %225 = sbr.rel (%p222) target = $region36
    $region35: #{tpu_custom_call.1} parent=5 // pred_region
      %s226 = ssub.s32 %s10, 1
      %s227 = smul.u32 32, %s20
      %p228 = scmp.lt.s32.totalorder %s227, 159
      %s229 = scalar_select %p228, %s227, 159
      %p230 = scmp.lt.s32.totalorder %s22, 0
      %s231 = scalar_select %p230, %s22, 0
      %s232 = sadd.s32 %s231, %s229
      %s233 = smul.addr %s232, 4
      %s234 = scalar_lea.vmem %s0, %s233
      %p235 = pneg %p57
      %p236 = pneg %p54
      %s237 = smul.u32 4, %s22
      %p238 = scmp.lt.s32.totalorder %s237, 3
      %s239 = scalar_select %p238, %s237, 3
      %p240 = scmp.lt.s32.totalorder %s21, 0
      %s241 = scalar_select %p240, %s21, 0
      %s242 = sadd.s32 %s241, %s239
      %s243 = smul.addr %s242, 4
      %s244 = scalar_lea.vmem %s1, %s243
      %p245 = pneg %p85
      %p246 = pneg %p82
      %p247 = scmp.lt.s32.totalorder %s21, 0
      %s248 = scalar_select %p247, %s21, 0
      %s249 = scalar_lea.vmem %s2, %s248
      %p250 = pneg %p111
      %p251 = pneg %p108
      %p252 = scmp.lt.s32.totalorder %s21, 0
      %s253 = scalar_select %p252, %s21, 0
      %s254 = scalar_lea.vmem %s3, %s253
      %p255 = pneg %p137
      %p256 = pneg %p134
      %p257 = pneg %p165
      %p258 = pneg %p162
      %s259 = smul.u32 32, %s20
      %p260 = scmp.lt.s32.totalorder %s259, 159
      %s261 = scalar_select %p260, %s259, 159
      %p262 = scmp.lt.s32.totalorder %s21, 0
      %s263 = scalar_select %p262, %s21, 0
      %s264 = sadd.s32 %s263, %s261
      %s265 = smul.addr %s264, 8
      %s266 = scalar_lea.vmem %s4, %s265
      %s267 = smul.u32 32, %s20
      %p268 = scmp.lt.s32.totalorder %s267, 159
      %s269 = scalar_select %p268, %s267, 159
      %p270 = scmp.lt.s32.totalorder %s22, 0
      %s271 = scalar_select %p270, %s22, 0
      %s272 = sadd.s32 %s271, %s269
      %s273 = smul.addr %s272, 4
      %s274 = scalar_lea.vmem %s0, %s273
      %s275 = smul.u32 32, %s20
      %s276 = smul.u32 4, %s22
      %p277 = scmp.lt.s32.totalorder %s276, 3
      %s278 = scalar_select %p277, %s276, 3
      %p279 = scmp.lt.s32.totalorder %s21, 0
      %s280 = scalar_select %p279, %s21, 0
      %s281 = sadd.s32 %s280, %s278
      %s282 = smul.addr %s281, 4
      %s283 = scalar_lea.vmem %s1, %s282
      %s284 = smul.u32 4, %s22
      %p285 = scmp.lt.s32.totalorder %s21, 0
      %s286 = scalar_select %p285, %s21, 0
      %s287 = scalar_lea.vmem %s2, %s286
      %p288 = scmp.lt.s32.totalorder %s21, 0
      %s289 = scalar_select %p288, %s21, 0
      %s290 = scalar_lea.vmem %s3, %s289
      %s291 = smul.u32 32, %s20
      %p292 = scmp.lt.s32.totalorder %s291, 159
      %s293 = scalar_select %p292, %s291, 159
      %p294 = scmp.lt.s32.totalorder %s21, 0
      %s295 = scalar_select %p294, %s21, 0
      %s296 = sadd.s32 %s295, %s293
      %s297 = smul.addr %s296, 8
      %s298 = scalar_lea.vmem %s4, %s297
      %s299 = smul.u32 32, %s20
      %p301 = scmp.eq.s32.totalorder %s22, 0
      // Predicated region
      $region37: #{tpu_custom_call.1} parent=35 // pred_check
        %p302 = pneg %p301
      $region38: #{tpu_custom_call.1} parent=35 // pred_check_branch
        %304 = sbr.rel (%p302) target = $region40
      $region39: #{tpu_custom_call.1} parent=35 // pred_region
        %vm305 = vcmask 523264
        %306 = vst.msk [vmem:[#allocation2] sm:$0xff] %vm305, 0.0
        %307 = vst.msk [vmem:[#allocation2 + $0x8] sm:$0xff] %vm305, 0.0
        %308 = vst.msk [vmem:[#allocation2 + $0x10] sm:$0xff] %vm305, 0.0
        %309 = vst.msk [vmem:[#allocation2 + $0x18] sm:$0xff] %vm305, 0.0
        %310 = vst.msk [vmem:[#allocation2 + $0x20] sm:$0xff] %vm305, 0.0
        %311 = vst.msk [vmem:[#allocation2 + $0x28] sm:$0xff] %vm305, 0.0
        %312 = vst.msk [vmem:[#allocation2 + $0x30] sm:$0xff] %vm305, 0.0
        %313 = vst.msk [vmem:[#allocation2 + $0x38] sm:$0xff] %vm305, 0.0
        %314 = vst.msk [vmem:[#allocation2 + $0x40] sm:$0xff] %vm305, 0.0
        %315 = vst.msk [vmem:[#allocation2 + $0x48] sm:$0xff] %vm305, 0.0
        %316 = vst.msk [vmem:[#allocation2 + $0x50] sm:$0xff] %vm305, 0.0
        %317 = vst.msk [vmem:[#allocation2 + $0x58] sm:$0xff] %vm305, 0.0
        %318 = vst.msk [vmem:[#allocation2 + $0x60] sm:$0xff] %vm305, 0.0
        %319 = vst.msk [vmem:[#allocation2 + $0x68] sm:$0xff] %vm305, 0.0
        %320 = vst.msk [vmem:[#allocation2 + $0x70] sm:$0xff] %vm305, 0.0
        %321 = vst.msk [vmem:[#allocation2 + $0x78] sm:$0xff] %vm305, 0.0
        %322 = vst.msk [vmem:[#allocation2 + $0x80] sm:$0xff] %vm305, 0.0
        %323 = vst.msk [vmem:[#allocation2 + $0x88] sm:$0xff] %vm305, 0.0
        %324 = vst.msk [vmem:[#allocation2 + $0x90] sm:$0xff] %vm305, 0.0
        %325 = vst.msk [vmem:[#allocation2 + $0x98] sm:$0xff] %vm305, 0.0
        %326 = vst.msk [vmem:[#allocation2 + $0xa0] sm:$0xff] %vm305, 0.0
        %327 = vst.msk [vmem:[#allocation2 + $0xa8] sm:$0xff] %vm305, 0.0
        %328 = vst.msk [vmem:[#allocation2 + $0xb0] sm:$0xff] %vm305, 0.0
        %329 = vst.msk [vmem:[#allocation2 + $0xb8] sm:$0xff] %vm305, 0.0
        %330 = vst.msk [vmem:[#allocation2 + $0xc0] sm:$0xff] %vm305, 0.0
        %331 = vst.msk [vmem:[#allocation2 + $0xc8] sm:$0xff] %vm305, 0.0
        %332 = vst.msk [vmem:[#allocation2 + $0xd0] sm:$0xff] %vm305, 0.0
        %333 = vst.msk [vmem:[#allocation2 + $0xd8] sm:$0xff] %vm305, 0.0
        %334 = vst.msk [vmem:[#allocation2 + $0xe0] sm:$0xff] %vm305, 0.0
        %335 = vst.msk [vmem:[#allocation2 + $0xe8] sm:$0xff] %vm305, 0.0
        %336 = vst.msk [vmem:[#allocation2 + $0xf0] sm:$0xff] %vm305, 0.0
        %337 = vst.msk [vmem:[#allocation2 + $0xf8] sm:$0xff] %vm305, 0.0
      $region40: #{tpu_custom_call.1} parent=35 // pred_fallthru
        _
      %v338 = vld [vmem:[#allocation2] sm:$0xff]
      %v339 = vld [vmem:[#allocation2 + $0x8] sm:$0xff]
      %v340 = vld [vmem:[#allocation2 + $0x10] sm:$0xff]
      %v341 = vld [vmem:[#allocation2 + $0x18] sm:$0xff]
      %v342 = vld [vmem:[#allocation2 + $0x20] sm:$0xff]
      %v343 = vld [vmem:[#allocation2 + $0x28] sm:$0xff]
      %v344 = vld [vmem:[#allocation2 + $0x30] sm:$0xff]
      %v345 = vld [vmem:[#allocation2 + $0x38] sm:$0xff]
      %v346 = vld [vmem:[#allocation2 + $0x40] sm:$0xff]
      %v347 = vld [vmem:[#allocation2 + $0x48] sm:$0xff]
      %v348 = vld [vmem:[#allocation2 + $0x50] sm:$0xff]
      %v349 = vld [vmem:[#allocation2 + $0x58] sm:$0xff]
      %v350 = vld [vmem:[#allocation2 + $0x60] sm:$0xff]
      %v351 = vld [vmem:[#allocation2 + $0x68] sm:$0xff]
      %v352 = vld [vmem:[#allocation2 + $0x70] sm:$0xff]
      %v353 = vld [vmem:[#allocation2 + $0x78] sm:$0xff]
      %v354 = vld [vmem:[#allocation2 + $0x80] sm:$0xff]
      %v355 = vld [vmem:[#allocation2 + $0x88] sm:$0xff]
      %v356 = vld [vmem:[#allocation2 + $0x90] sm:$0xff]
      %v357 = vld [vmem:[#allocation2 + $0x98] sm:$0xff]
      %v358 = vld [vmem:[#allocation2 + $0xa0] sm:$0xff]
      %v359 = vld [vmem:[#allocation2 + $0xa8] sm:$0xff]
      %v360 = vld [vmem:[#allocation2 + $0xb0] sm:$0xff]
      %v361 = vld [vmem:[#allocation2 + $0xb8] sm:$0xff]
      %v362 = vld [vmem:[#allocation2 + $0xc0] sm:$0xff]
      %v363 = vld [vmem:[#allocation2 + $0xc8] sm:$0xff]
      %v364 = vld [vmem:[#allocation2 + $0xd0] sm:$0xff]
      %v365 = vld [vmem:[#allocation2 + $0xd8] sm:$0xff]
      %v366 = vld [vmem:[#allocation2 + $0xe0] sm:$0xff]
      %v367 = vld [vmem:[#allocation2 + $0xe8] sm:$0xff]
      %v368 = vld [vmem:[#allocation2 + $0xf0] sm:$0xff]
      %v369 = vld [vmem:[#allocation2 + $0xf8] sm:$0xff]
      %v370 = vld [vmem:[%s274] sm:$0xf]
      %v371 = vld [vmem:[%s274 + $0x4] sm:$0xf]
      %v372 = vld [vmem:[%s274 + $0x8] sm:$0xf]
      %v373 = vld [vmem:[%s274 + $0xc] sm:$0xf]
      %v374 = vld [vmem:[%s274 + $0x10] sm:$0xf]
      %v375 = vld [vmem:[%s274 + $0x14] sm:$0xf]
      %v376 = vld [vmem:[%s274 + $0x18] sm:$0xf]
      %v377 = vld [vmem:[%s274 + $0x1c] sm:$0xf]
      %v378 = vld [vmem:[%s274 + $0x20] sm:$0xf]
      %v379 = vld [vmem:[%s274 + $0x24] sm:$0xf]
      %v380 = vld [vmem:[%s274 + $0x28] sm:$0xf]
      %v381 = vld [vmem:[%s274 + $0x2c] sm:$0xf]
      %v382 = vld [vmem:[%s274 + $0x30] sm:$0xf]
      %v383 = vld [vmem:[%s274 + $0x34] sm:$0xf]
      %v384 = vld [vmem:[%s274 + $0x38] sm:$0xf]
      %v385 = vld [vmem:[%s274 + $0x3c] sm:$0xf]
      %v386 = vld [vmem:[%s274 + $0x40] sm:$0xf]
      %v387 = vld [vmem:[%s274 + $0x44] sm:$0xf]
      %v388 = vld [vmem:[%s274 + $0x48] sm:$0xf]
      %v389 = vld [vmem:[%s274 + $0x4c] sm:$0xf]
      %v390 = vld [vmem:[%s274 + $0x50] sm:$0xf]
      %v391 = vld [vmem:[%s274 + $0x54] sm:$0xf]
      %v392 = vld [vmem:[%s274 + $0x58] sm:$0xf]
      %v393 = vld [vmem:[%s274 + $0x5c] sm:$0xf]
      %v394 = vld [vmem:[%s274 + $0x60] sm:$0xf]
      %v395 = vld [vmem:[%s274 + $0x64] sm:$0xf]
      %v396 = vld [vmem:[%s274 + $0x68] sm:$0xf]
      %v397 = vld [vmem:[%s274 + $0x6c] sm:$0xf]
      %v398 = vld [vmem:[%s274 + $0x70] sm:$0xf]
      %v399 = vld [vmem:[%s274 + $0x74] sm:$0xf]
      %v400 = vld [vmem:[%s274 + $0x78] sm:$0xf]
      %v401 = vld [vmem:[%s274 + $0x7c] sm:$0xf]
      %v402 = vld [vmem:[%s283] sm:$0xf]
      %v403 = vld [vmem:[%s283 + $0x4] sm:$0xf]
      %v404 = vld [vmem:[%s283 + $0x8] sm:$0xf]
      %v405 = vld [vmem:[%s283 + $0xc] sm:$0x3]
      %v438 = vunpack.c.l.b16 %v370
      %v439 = vunpack.c.l.b16 %v371
      %v440 = vunpack.c.l.b16 %v372
      %v441 = vunpack.c.l.b16 %v373
      %v442 = vunpack.c.l.b16 %v374
      %v443 = vunpack.c.l.b16 %v375
      %v444 = vunpack.c.l.b16 %v376
      %v445 = vunpack.c.l.b16 %v377
      %v446 = vunpack.c.l.b16 %v378
      %v447 = vunpack.c.l.b16 %v379
      %v448 = vunpack.c.l.b16 %v380
      %v449 = vunpack.c.l.b16 %v381
      %v450 = vunpack.c.l.b16 %v382
      %v451 = vunpack.c.l.b16 %v383
      %v452 = vunpack.c.l.b16 %v384
      %v453 = vunpack.c.l.b16 %v385
      %v454 = vunpack.c.l.b16 %v386
      %v455 = vunpack.c.l.b16 %v387
      %v456 = vunpack.c.l.b16 %v388
      %v457 = vunpack.c.l.b16 %v389
      %v458 = vunpack.c.l.b16 %v390
      %v459 = vunpack.c.l.b16 %v391
      %v460 = vunpack.c.l.b16 %v392
      %v461 = vunpack.c.l.b16 %v393
      %v462 = vunpack.c.l.b16 %v394
      %v463 = vunpack.c.l.b16 %v395
      %v464 = vunpack.c.l.b16 %v396
      %v465 = vunpack.c.l.b16 %v397
      %v466 = vunpack.c.l.b16 %v398
      %v467 = vunpack.c.l.b16 %v399
      %v468 = vunpack.c.l.b16 %v400
      %v469 = vunpack.c.l.b16 %v401
      %v470 = vpack.c.b16 %v439, %v438
      %v471 = vpack.c.b16 %v441, %v440
      %v472 = vpack.c.b16 %v443, %v442
      %v473 = vpack.c.b16 %v445, %v444
      %v474 = vpack.c.b16 %v447, %v446
      %v475 = vpack.c.b16 %v449, %v448
      %v476 = vpack.c.b16 %v451, %v450
      %v477 = vpack.c.b16 %v453, %v452
      %v478 = vpack.c.b16 %v455, %v454
      %v479 = vpack.c.b16 %v457, %v456
      %v480 = vpack.c.b16 %v459, %v458
      %v481 = vpack.c.b16 %v461, %v460
      %v482 = vpack.c.b16 %v463, %v462
      %v483 = vpack.c.b16 %v465, %v464
      %v484 = vpack.c.b16 %v467, %v466
      %v485 = vpack.c.b16 %v469, %v468
      %v490 = vunpack.c.l.b16 %v402
      %v491 = vunpack.c.l.b16 %v403
      %v492 = vunpack.c.l.b16 %v404
      %v493 = vunpack.c.l.b16 %v405
      %v494 = vpack.c.b16 %v491, %v490
      %v495 = vpack.c.b16 %v493, %v492
      %vm497 = vcmask 220160
      %v499 = vsel %vm497, %v470, 0
      %v502 = vsel %vm497, %v471, 0
      %v505 = vsel %vm497, %v472, 0
      %v508 = vsel %vm497, %v473, 0
      %v511 = vsel %vm497, %v474, 0
      %v514 = vsel %vm497, %v475, 0
      %v517 = vsel %vm497, %v476, 0
      %v520 = vsel %vm497, %v477, 0
      %v523 = vsel %vm497, %v478, 0
      %v526 = vsel %vm497, %v479, 0
      %v529 = vsel %vm497, %v480, 0
      %v532 = vsel %vm497, %v481, 0
      %v535 = vsel %vm497, %v482, 0
      %v538 = vsel %vm497, %v483, 0
      %v541 = vsel %vm497, %v484, 0
      %v544 = vsel %vm497, %v485, 0
      %vm546 = vcmask 1044480
      %vm547 = vcmask 1045504
      %v548 = vsel %vm546, 4294967295, 65535
      %v549 = vsel %vm547, %v548, 0
      %v551 = vand.u32 %v495, %v549
      %553 = vmatpush.bf16.msra.mxu0 0
      %554 = vmatpush.bf16.msra.mxu0 0
      %555 = vmatpush.bf16.msra.mxu0 0
      %556 = vmatpush.bf16.msra.mxu0 0
      %557 = vmatpush.bf16.msra.mxu0 0
      %558 = vmatpush.bf16.msra.mxu0 0
      %559 = vmatpush.bf16.msra.mxu0 %v551
      %560 = vmatpush.bf16.msra.mxu0 %v494
      %561 = vmatmul.bf16.gmra.mxu0 %v499
      %v562 = vpop.f32.mrf.mxu0
      %v563 = vadd.f32 0.0, %v562
      %v564 = vpop.f32.mrf.mxu0
      %v565 = vadd.f32 0.0, %v564
      %566 = vmatmul.bf16.gmra.mxu0 %v502
      %v567 = vpop.f32.mrf.mxu0
      %v568 = vadd.f32 0.0, %v567
      %v569 = vpop.f32.mrf.mxu0
      %v570 = vadd.f32 0.0, %v569
      %571 = vmatmul.bf16.gmra.mxu0 %v505
      %v572 = vpop.f32.mrf.mxu0
      %v573 = vadd.f32 0.0, %v572
      %v574 = vpop.f32.mrf.mxu0
      %v575 = vadd.f32 0.0, %v574
      %576 = vmatmul.bf16.gmra.mxu0 %v508
      %v577 = vpop.f32.mrf.mxu0
      %v578 = vadd.f32 0.0, %v577
      %v579 = vpop.f32.mrf.mxu0
      %v580 = vadd.f32 0.0, %v579
      %581 = vmatmul.bf16.gmra.mxu0 %v511
      %v582 = vpop.f32.mrf.mxu0
      %v583 = vadd.f32 0.0, %v582
      %v584 = vpop.f32.mrf.mxu0
      %v585 = vadd.f32 0.0, %v584
      %586 = vmatmul.bf16.gmra.mxu0 %v514
      %v587 = vpop.f32.mrf.mxu0
      %v588 = vadd.f32 0.0, %v587
      %v589 = vpop.f32.mrf.mxu0
      %v590 = vadd.f32 0.0, %v589
      %591 = vmatmul.bf16.gmra.mxu0 %v517
      %v592 = vpop.f32.mrf.mxu0
      %v593 = vadd.f32 0.0, %v592
      %v594 = vpop.f32.mrf.mxu0
      %v595 = vadd.f32 0.0, %v594
      %596 = vmatmul.bf16.gmra.mxu0 %v520
      %v597 = vpop.f32.mrf.mxu0
      %v598 = vadd.f32 0.0, %v597
      %v599 = vpop.f32.mrf.mxu0
      %v600 = vadd.f32 0.0, %v599
      %601 = vmatmul.bf16.gmra.mxu0 %v523
      %v602 = vpop.f32.mrf.mxu0
      %v603 = vadd.f32 0.0, %v602
      %v604 = vpop.f32.mrf.mxu0
      %v605 = vadd.f32 0.0, %v604
      %606 = vmatmul.bf16.gmra.mxu0 %v526
      %v607 = vpop.f32.mrf.mxu0
      %v608 = vadd.f32 0.0, %v607
      %v609 = vpop.f32.mrf.mxu0
      %v610 = vadd.f32 0.0, %v609
      %611 = vmatmul.bf16.gmra.mxu0 %v529
      %v612 = vpop.f32.mrf.mxu0
      %v613 = vadd.f32 0.0, %v612
      %v614 = vpop.f32.mrf.mxu0
      %v615 = vadd.f32 0.0, %v614
      %616 = vmatmul.bf16.gmra.mxu0 %v532
      %v617 = vpop.f32.mrf.mxu0
      %v618 = vadd.f32 0.0, %v617
      %v619 = vpop.f32.mrf.mxu0
      %v620 = vadd.f32 0.0, %v619
      %621 = vmatmul.bf16.gmra.mxu0 %v535
      %v622 = vpop.f32.mrf.mxu0
      %v623 = vadd.f32 0.0, %v622
      %v624 = vpop.f32.mrf.mxu0
      %v625 = vadd.f32 0.0, %v624
      %626 = vmatmul.bf16.gmra.mxu0 %v538
      %v627 = vpop.f32.mrf.mxu0
      %v628 = vadd.f32 0.0, %v627
      %v629 = vpop.f32.mrf.mxu0
      %v630 = vadd.f32 0.0, %v629
      %631 = vmatmul.bf16.gmra.mxu0 %v541
      %v632 = vpop.f32.mrf.mxu0
      %v633 = vadd.f32 0.0, %v632
      %v634 = vpop.f32.mrf.mxu0
      %v635 = vadd.f32 0.0, %v634
      %636 = vmatmul.bf16.gmra.mxu0 %v544
      %v637 = vpop.f32.mrf.mxu0
      %v638 = vadd.f32 0.0, %v637
      %v639 = vpop.f32.mrf.mxu0
      %v640 = vadd.f32 0.0, %v639
      %641 = vdwg.mxu0
      %v642 = vadd.f32 %v338, %v563
      %v643 = vadd.f32 %v339, %v565
      %v644 = vadd.f32 %v340, %v568
      %v645 = vadd.f32 %v341, %v570
      %v646 = vadd.f32 %v342, %v573
      %v647 = vadd.f32 %v343, %v575
      %v648 = vadd.f32 %v344, %v578
      %v649 = vadd.f32 %v345, %v580
      %v650 = vadd.f32 %v346, %v583
      %v651 = vadd.f32 %v347, %v585
      %v652 = vadd.f32 %v348, %v588
      %v653 = vadd.f32 %v349, %v590
      %v654 = vadd.f32 %v350, %v593
      %v655 = vadd.f32 %v351, %v595
      %v656 = vadd.f32 %v352, %v598
      %v657 = vadd.f32 %v353, %v600
      %v658 = vadd.f32 %v354, %v603
      %v659 = vadd.f32 %v355, %v605
      %v660 = vadd.f32 %v356, %v608
      %v661 = vadd.f32 %v357, %v610
      %v662 = vadd.f32 %v358, %v613
      %v663 = vadd.f32 %v359, %v615
      %v664 = vadd.f32 %v360, %v618
      %v665 = vadd.f32 %v361, %v620
      %v666 = vadd.f32 %v362, %v623
      %v667 = vadd.f32 %v363, %v625
      %v668 = vadd.f32 %v364, %v628
      %v669 = vadd.f32 %v365, %v630
      %v670 = vadd.f32 %v366, %v633
      %v671 = vadd.f32 %v367, %v635
      %v672 = vadd.f32 %v368, %v638
      %v673 = vadd.f32 %v369, %v640
      %vm674 = vcmask 523264
      %675 = vst.msk [vmem:[#allocation2] sm:$0xff] %vm674, %v642
      %676 = vst.msk [vmem:[#allocation2 + $0x8] sm:$0xff] %vm674, %v643
      %677 = vst.msk [vmem:[#allocation2 + $0x10] sm:$0xff] %vm674, %v644
      %678 = vst.msk [vmem:[#allocation2 + $0x18] sm:$0xff] %vm674, %v645
      %679 = vst.msk [vmem:[#allocation2 + $0x20] sm:$0xff] %vm674, %v646
      %680 = vst.msk [vmem:[#allocation2 + $0x28] sm:$0xff] %vm674, %v647
      %681 = vst.msk [vmem:[#allocation2 + $0x30] sm:$0xff] %vm674, %v648
      %682 = vst.msk [vmem:[#allocation2 + $0x38] sm:$0xff] %vm674, %v649
      %683 = vst.msk [vmem:[#allocation2 + $0x40] sm:$0xff] %vm674, %v650
      %684 = vst.msk [vmem:[#allocation2 + $0x48] sm:$0xff] %vm674, %v651
      %685 = vst.msk [vmem:[#allocation2 + $0x50] sm:$0xff] %vm674, %v652
      %686 = vst.msk [vmem:[#allocation2 + $0x58] sm:$0xff] %vm674, %v653
      %687 = vst.msk [vmem:[#allocation2 + $0x60] sm:$0xff] %vm674, %v654
      %688 = vst.msk [vmem:[#allocation2 + $0x68] sm:$0xff] %vm674, %v655
      %689 = vst.msk [vmem:[#allocation2 + $0x70] sm:$0xff] %vm674, %v656
      %690 = vst.msk [vmem:[#allocation2 + $0x78] sm:$0xff] %vm674, %v657
      %691 = vst.msk [vmem:[#allocation2 + $0x80] sm:$0xff] %vm674, %v658
      %692 = vst.msk [vmem:[#allocation2 + $0x88] sm:$0xff] %vm674, %v659
      %693 = vst.msk [vmem:[#allocation2 + $0x90] sm:$0xff] %vm674, %v660
      %694 = vst.msk [vmem:[#allocation2 + $0x98] sm:$0xff] %vm674, %v661
      %695 = vst.msk [vmem:[#allocation2 + $0xa0] sm:$0xff] %vm674, %v662
      %696 = vst.msk [vmem:[#allocation2 + $0xa8] sm:$0xff] %vm674, %v663
      %697 = vst.msk [vmem:[#allocation2 + $0xb0] sm:$0xff] %vm674, %v664
      %698 = vst.msk [vmem:[#allocation2 + $0xb8] sm:$0xff] %vm674, %v665
      %699 = vst.msk [vmem:[#allocation2 + $0xc0] sm:$0xff] %vm674, %v666
      %700 = vst.msk [vmem:[#allocation2 + $0xc8] sm:$0xff] %vm674, %v667
      %701 = vst.msk [vmem:[#allocation2 + $0xd0] sm:$0xff] %vm674, %v668
      %702 = vst.msk [vmem:[#allocation2 + $0xd8] sm:$0xff] %vm674, %v669
      %703 = vst.msk [vmem:[#allocation2 + $0xe0] sm:$0xff] %vm674, %v670
      %704 = vst.msk [vmem:[#allocation2 + $0xe8] sm:$0xff] %vm674, %v671
      %705 = vst.msk [vmem:[#allocation2 + $0xf0] sm:$0xff] %vm674, %v672
      %706 = vst.msk [vmem:[#allocation2 + $0xf8] sm:$0xff] %vm674, %v673
      // Predicated region
      $region41: #{tpu_custom_call.1} parent=35 // pred_check
        %p707 = pneg %p301
      $region42: #{tpu_custom_call.1} parent=35 // pred_check_branch
        %709 = sbr.rel (%p707) target = $region44
      $region43: #{tpu_custom_call.1} parent=35 // pred_region
        %v710 = vld [vmem:[#allocation2] sm:$0xff]
        %v711 = vld [vmem:[#allocation2 + $0x8] sm:$0xff]
        %v712 = vld [vmem:[#allocation2 + $0x10] sm:$0xff]
        %v713 = vld [vmem:[#allocation2 + $0x18] sm:$0xff]
        %v714 = vld [vmem:[#allocation2 + $0x20] sm:$0xff]
        %v715 = vld [vmem:[#allocation2 + $0x28] sm:$0xff]
        %v716 = vld [vmem:[#allocation2 + $0x30] sm:$0xff]
        %v717 = vld [vmem:[#allocation2 + $0x38] sm:$0xff]
        %v718 = vld [vmem:[#allocation2 + $0x40] sm:$0xff]
        %v719 = vld [vmem:[#allocation2 + $0x48] sm:$0xff]
        %v720 = vld [vmem:[#allocation2 + $0x50] sm:$0xff]
        %v721 = vld [vmem:[#allocation2 + $0x58] sm:$0xff]
        %v722 = vld [vmem:[#allocation2 + $0x60] sm:$0xff]
        %v723 = vld [vmem:[#allocation2 + $0x68] sm:$0xff]
        %v724 = vld [vmem:[#allocation2 + $0x70] sm:$0xff]
        %v725 = vld [vmem:[#allocation2 + $0x78] sm:$0xff]
        %v726 = vld [vmem:[#allocation2 + $0x80] sm:$0xff]
        %v727 = vld [vmem:[#allocation2 + $0x88] sm:$0xff]
        %v728 = vld [vmem:[#allocation2 + $0x90] sm:$0xff]
        %v729 = vld [vmem:[#allocation2 + $0x98] sm:$0xff]
        %v730 = vld [vmem:[#allocation2 + $0xa0] sm:$0xff]
        %v731 = vld [vmem:[#allocation2 + $0xa8] sm:$0xff]
        %v732 = vld [vmem:[#allocation2 + $0xb0] sm:$0xff]
        %v733 = vld [vmem:[#allocation2 + $0xb8] sm:$0xff]
        %v734 = vld [vmem:[#allocation2 + $0xc0] sm:$0xff]
        %v735 = vld [vmem:[#allocation2 + $0xc8] sm:$0xff]
        %v736 = vld [vmem:[#allocation2 + $0xd0] sm:$0xff]
        %v737 = vld [vmem:[#allocation2 + $0xd8] sm:$0xff]
        %v738 = vld [vmem:[#allocation2 + $0xe0] sm:$0xff]
        %v739 = vld [vmem:[#allocation2 + $0xe8] sm:$0xff]
        %v740 = vld [vmem:[#allocation2 + $0xf0] sm:$0xff]
        %v741 = vld [vmem:[#allocation2 + $0xf8] sm:$0xff]
        %v742 = vld [vmem:[%s287] sm:$0x1]
        %v744 = vperm.slane %v742, 0
        %v746 = vmul.f32 %v710, %v744
        %v747 = vmul.f32 %v711, %v744
        %v748 = vmul.f32 %v712, %v744
        %v749 = vmul.f32 %v713, %v744
        %v750 = vmul.f32 %v714, %v744
        %v751 = vmul.f32 %v715, %v744
        %v752 = vmul.f32 %v716, %v744
        %v753 = vmul.f32 %v717, %v744
        %v754 = vmul.f32 %v718, %v744
        %v755 = vmul.f32 %v719, %v744
        %v756 = vmul.f32 %v720, %v744
        %v757 = vmul.f32 %v721, %v744
        %v758 = vmul.f32 %v722, %v744
        %v759 = vmul.f32 %v723, %v744
        %v760 = vmul.f32 %v724, %v744
        %v761 = vmul.f32 %v725, %v744
        %v762 = vmul.f32 %v726, %v744
        %v763 = vmul.f32 %v727, %v744
        %v764 = vmul.f32 %v728, %v744
        %v765 = vmul.f32 %v729, %v744
        %v766 = vmul.f32 %v730, %v744
        %v767 = vmul.f32 %v731, %v744
        %v768 = vmul.f32 %v732, %v744
        %v769 = vmul.f32 %v733, %v744
        %v770 = vmul.f32 %v734, %v744
        %v771 = vmul.f32 %v735, %v744
        %v772 = vmul.f32 %v736, %v744
        %v773 = vmul.f32 %v737, %v744
        %v774 = vmul.f32 %v738, %v744
        %v775 = vmul.f32 %v739, %v744
        %v776 = vmul.f32 %v740, %v744
        %v777 = vmul.f32 %v741, %v744
        %v778 = vld [vmem:[%s290] sm:$0x1]
        %v780 = vperm.slane %v778, 0
        %v782 = vadd.f32 %v746, %v780
        %v783 = vadd.f32 %v747, %v780
        %v784 = vadd.f32 %v748, %v780
        %v785 = vadd.f32 %v749, %v780
        %v786 = vadd.f32 %v750, %v780
        %v787 = vadd.f32 %v751, %v780
        %v788 = vadd.f32 %v752, %v780
        %v789 = vadd.f32 %v753, %v780
        %v790 = vadd.f32 %v754, %v780
        %v791 = vadd.f32 %v755, %v780
        %v792 = vadd.f32 %v756, %v780
        %v793 = vadd.f32 %v757, %v780
        %v794 = vadd.f32 %v758, %v780
        %v795 = vadd.f32 %v759, %v780
        %v796 = vadd.f32 %v760, %v780
        %v797 = vadd.f32 %v761, %v780
        %v798 = vadd.f32 %v762, %v780
        %v799 = vadd.f32 %v763, %v780
        %v800 = vadd.f32 %v764, %v780
        %v801 = vadd.f32 %v765, %v780
        %v802 = vadd.f32 %v766, %v780
        %v803 = vadd.f32 %v767, %v780
        %v804 = vadd.f32 %v768, %v780
        %v805 = vadd.f32 %v769, %v780
        %v806 = vadd.f32 %v770, %v780
        %v807 = vadd.f32 %v771, %v780
        %v808 = vadd.f32 %v772, %v780
        %v809 = vadd.f32 %v773, %v780
        %v810 = vadd.f32 %v774, %v780
        %v811 = vadd.f32 %v775, %v780
        %v812 = vadd.f32 %v776, %v780
        %v813 = vadd.f32 %v777, %v780
        %vm814 = vcmp.ge.f32.partialorder %v782, 0.0
        %vm815 = vcmp.ge.f32.partialorder %v783, 0.0
        %vm816 = vcmp.ge.f32.partialorder %v784, 0.0
        %vm817 = vcmp.ge.f32.partialorder %v785, 0.0
        %vm818 = vcmp.ge.f32.partialorder %v786, 0.0
        %vm819 = vcmp.ge.f32.partialorder %v787, 0.0
        %vm820 = vcmp.ge.f32.partialorder %v788, 0.0
        %vm821 = vcmp.ge.f32.partialorder %v789, 0.0
        %vm822 = vcmp.ge.f32.partialorder %v790, 0.0
        %vm823 = vcmp.ge.f32.partialorder %v791, 0.0
        %vm824 = vcmp.ge.f32.partialorder %v792, 0.0
        %vm825 = vcmp.ge.f32.partialorder %v793, 0.0
        %vm826 = vcmp.ge.f32.partialorder %v794, 0.0
        %vm827 = vcmp.ge.f32.partialorder %v795, 0.0
        %vm828 = vcmp.ge.f32.partialorder %v796, 0.0
        %vm829 = vcmp.ge.f32.partialorder %v797, 0.0
        %vm830 = vcmp.ge.f32.partialorder %v798, 0.0
        %vm831 = vcmp.ge.f32.partialorder %v799, 0.0
        %vm832 = vcmp.ge.f32.partialorder %v800, 0.0
        %vm833 = vcmp.ge.f32.partialorder %v801, 0.0
        %vm834 = vcmp.ge.f32.partialorder %v802, 0.0
        %vm835 = vcmp.ge.f32.partialorder %v803, 0.0
        %vm836 = vcmp.ge.f32.partialorder %v804, 0.0
        %vm837 = vcmp.ge.f32.partialorder %v805, 0.0
        %vm838 = vcmp.ge.f32.partialorder %v806, 0.0
        %vm839 = vcmp.ge.f32.partialorder %v807, 0.0
        %vm840 = vcmp.ge.f32.partialorder %v808, 0.0
        %vm841 = vcmp.ge.f32.partialorder %v809, 0.0
        %vm842 = vcmp.ge.f32.partialorder %v810, 0.0
        %vm843 = vcmp.ge.f32.partialorder %v811, 0.0
        %vm844 = vcmp.ge.f32.partialorder %v812, 0.0
        %vm845 = vcmp.ge.f32.partialorder %v813, 0.0
        %v846 = vmul.f32 %v782, 0.25
        %v847 = vmul.f32 %v783, 0.25
        %v848 = vmul.f32 %v784, 0.25
        %v849 = vmul.f32 %v785, 0.25
        %v850 = vmul.f32 %v786, 0.25
        %v851 = vmul.f32 %v787, 0.25
        %v852 = vmul.f32 %v788, 0.25
        %v853 = vmul.f32 %v789, 0.25
        %v854 = vmul.f32 %v790, 0.25
        %v855 = vmul.f32 %v791, 0.25
        %v856 = vmul.f32 %v792, 0.25
        %v857 = vmul.f32 %v793, 0.25
        %v858 = vmul.f32 %v794, 0.25
        %v859 = vmul.f32 %v795, 0.25
        %v860 = vmul.f32 %v796, 0.25
        %v861 = vmul.f32 %v797, 0.25
        %v862 = vmul.f32 %v798, 0.25
        %v863 = vmul.f32 %v799, 0.25
        %v864 = vmul.f32 %v800, 0.25
        %v865 = vmul.f32 %v801, 0.25
        %v866 = vmul.f32 %v802, 0.25
        %v867 = vmul.f32 %v803, 0.25
        %v868 = vmul.f32 %v804, 0.25
        %v869 = vmul.f32 %v805, 0.25
        %v870 = vmul.f32 %v806, 0.25
        %v871 = vmul.f32 %v807, 0.25
        %v872 = vmul.f32 %v808, 0.25
        %v873 = vmul.f32 %v809, 0.25
        %v874 = vmul.f32 %v810, 0.25
        %v875 = vmul.f32 %v811, 0.25
        %v876 = vmul.f32 %v812, 0.25
        %v877 = vmul.f32 %v813, 0.25
        %v878 = vsel %vm814, %v782, %v846
        %v879 = vsel %vm815, %v783, %v847
        %v880 = vsel %vm816, %v784, %v848
        %v881 = vsel %vm817, %v785, %v849
        %v882 = vsel %vm818, %v786, %v850
        %v883 = vsel %vm819, %v787, %v851
        %v884 = vsel %vm820, %v788, %v852
        %v885 = vsel %vm821, %v789, %v853
        %v886 = vsel %vm822, %v790, %v854
        %v887 = vsel %vm823, %v791, %v855
        %v888 = vsel %vm824, %v792, %v856
        %v889 = vsel %vm825, %v793, %v857
        %v890 = vsel %vm826, %v794, %v858
        %v891 = vsel %vm827, %v795, %v859
        %v892 = vsel %vm828, %v796, %v860
        %v893 = vsel %vm829, %v797, %v861
        %v894 = vsel %vm830, %v798, %v862
        %v895 = vsel %vm831, %v799, %v863
        %v896 = vsel %vm832, %v800, %v864
        %v897 = vsel %vm833, %v801, %v865
        %v898 = vsel %vm834, %v802, %v866
        %v899 = vsel %vm835, %v803, %v867
        %v900 = vsel %vm836, %v804, %v868
        %v901 = vsel %vm837, %v805, %v869
        %v902 = vsel %vm838, %v806, %v870
        %v903 = vsel %vm839, %v807, %v871
        %v904 = vsel %vm840, %v808, %v872
        %v905 = vsel %vm841, %v809, %v873
        %v906 = vsel %vm842, %v810, %v874
        %v907 = vsel %vm843, %v811, %v875
        %v908 = vsel %vm844, %v812, %v876
        %v909 = vsel %vm845, %v813, %v877
        %910 = vst.msk [vmem:[%s298] sm:$0xff] %vm674, %v878
        %911 = vst.msk [vmem:[%s298 + $0x8] sm:$0xff] %vm674, %v879
        %912 = vst.msk [vmem:[%s298 + $0x10] sm:$0xff] %vm674, %v880
        %913 = vst.msk [vmem:[%s298 + $0x18] sm:$0xff] %vm674, %v881
        %914 = vst.msk [vmem:[%s298 + $0x20] sm:$0xff] %vm674, %v882
        %915 = vst.msk [vmem:[%s298 + $0x28] sm:$0xff] %vm674, %v883
        %916 = vst.msk [vmem:[%s298 + $0x30] sm:$0xff] %vm674, %v884
        %917 = vst.msk [vmem:[%s298 + $0x38] sm:$0xff] %vm674, %v885
        %918 = vst.msk [vmem:[%s298 + $0x40] sm:$0xff] %vm674, %v886
        %919 = vst.msk [vmem:[%s298 + $0x48] sm:$0xff] %vm674, %v887
        %920 = vst.msk [vmem:[%s298 + $0x50] sm:$0xff] %vm674, %v888
        %921 = vst.msk [vmem:[%s298 + $0x58] sm:$0xff] %vm674, %v889
        %922 = vst.msk [vmem:[%s298 + $0x60] sm:$0xff] %vm674, %v890
        %923 = vst.msk [vmem:[%s298 + $0x68] sm:$0xff] %vm674, %v891
        %924 = vst.msk [vmem:[%s298 + $0x70] sm:$0xff] %vm674, %v892
        %925 = vst.msk [vmem:[%s298 + $0x78] sm:$0xff] %vm674, %v893
        %926 = vst.msk [vmem:[%s298 + $0x80] sm:$0xff] %vm674, %v894
        %927 = vst.msk [vmem:[%s298 + $0x88] sm:$0xff] %vm674, %v895
        %928 = vst.msk [vmem:[%s298 + $0x90] sm:$0xff] %vm674, %v896
        %929 = vst.msk [vmem:[%s298 + $0x98] sm:$0xff] %vm674, %v897
        %930 = vst.msk [vmem:[%s298 + $0xa0] sm:$0xff] %vm674, %v898
        %931 = vst.msk [vmem:[%s298 + $0xa8] sm:$0xff] %vm674, %v899
        %932 = vst.msk [vmem:[%s298 + $0xb0] sm:$0xff] %vm674, %v900
        %933 = vst.msk [vmem:[%s298 + $0xb8] sm:$0xff] %vm674, %v901
        %934 = vst.msk [vmem:[%s298 + $0xc0] sm:$0xff] %vm674, %v902
        %935 = vst.msk [vmem:[%s298 + $0xc8] sm:$0xff] %vm674, %v903
        %936 = vst.msk [vmem:[%s298 + $0xd0] sm:$0xff] %vm674, %v904
        %937 = vst.msk [vmem:[%s298 + $0xd8] sm:$0xff] %vm674, %v905
        %938 = vst.msk [vmem:[%s298 + $0xe0] sm:$0xff] %vm674, %v906
        %939 = vst.msk [vmem:[%s298 + $0xe8] sm:$0xff] %vm674, %v907
        %940 = vst.msk [vmem:[%s298 + $0xf0] sm:$0xff] %vm674, %v908
        %941 = vst.msk [vmem:[%s298 + $0xf8] sm:$0xff] %vm674, %v909
      $region44: #{tpu_custom_call.1} parent=35 // pred_fallthru
        _
      %s942 = smul.u32 32, %s20
      %p943 = scmp.lt.s32.totalorder %s942, 159
      %s944 = scalar_select %p943, %s942, 159
      %p945 = scmp.lt.s32.totalorder %s21, 0
      %s946 = scalar_select %p945, %s21, 0
      %s947 = sadd.s32 %s946, %s944
      %s948 = smul.addr %s947, 8
      %s949 = scalar_lea.vmem %s4, %s948
      // Predicated region
      $region45: #{tpu_custom_call.1} parent=35 // pred_check
        %p950 = pneg %p162
      $region46: #{tpu_custom_call.1} parent=35 // pred_check_branch
        %952 = sbr.rel (%p950) target = $region48
      $region47: #{tpu_custom_call.1} parent=35 // pred_region
        %s953 = smul.u32 32, %s20
      $region48: #{tpu_custom_call.1} parent=35 // pred_fallthru
        _
    $region36: #{tpu_custom_call.1} parent=5 // pred_fallthru
      _
    %p954 = scmp.le.s32.totalorder 2, %s10
    // Predicated region
    $region49: #{tpu_custom_call.1} parent=5 // pred_check
      %p955 = pneg %p954
    $region50: #{tpu_custom_call.1} parent=5 // pred_check_branch
      %957 = sbr.rel (%p955) target = $region52
    $region51: #{tpu_custom_call.1} parent=5 // pred_region
      %s958 = ssub.s32 %s10, 2
      // Predicated region
      $region53: #{tpu_custom_call.1} parent=51 // pred_check
        %p959 = pneg %p168
      $region54: #{tpu_custom_call.1} parent=51 // pred_check_branch
        %961 = sbr.rel (%p959) target = $region56
      $region55: #{tpu_custom_call.1} parent=51 // pred_region
        %s962 = smul.u32 32, %s23
        %p963 = scmp.lt.s32.totalorder %s962, 159
        %s964 = scalar_select %p963, %s962, 159
        %p965 = scmp.lt.s32.totalorder %s24, 0
        %s966 = scalar_select %p965, %s24, 0
        %s967 = sadd.s32 %s966, %s964
        %s968 = smul.addr %s967, 8
        %s969 = scalar_lea.vmem %s4, %s968
      $region56: #{tpu_custom_call.1} parent=51 // pred_fallthru
        _
    $region52: #{tpu_custom_call.1} parent=5 // pred_fallthru
      _
  $region6: #{tpu_custom_call.1} parent=0 // loop_footer
    %s14 = sadd.s32 1, %s10
  $region7: #{tpu_custom_call.1} parent=0 // loop_footer_branch
    %9 = sbr.rel target = $region3
  $region8: #{tpu_custom_call.1} parent=0 // loop_exit
    _

</llo_original>
